<compile_context>
chip_gen: v7x
topology: tpu7x:2x2x1
jax: 0.10.0
libtpu: 0.0.40
codegen_flags: <defaults>
</compile_context>

<pallas_src>
import functools

import jax
import jax.numpy as jnp
from jax import lax
from jax.experimental import pallas as pl
from jax.experimental.pallas import tpu as pltpu


# ---------------------------------------------------------------------------
# Prep kernel (one-off, grid-less): full-batch BN fold + normalize_A + cheby basis.
# ---------------------------------------------------------------------------
def _prep_kernel(x_ref, A_ref, gamma_ref, beta_ref,
                 cheb_ref, scale_ref, shift_ref, *, K):
    B, N, F = x_ref.shape
    xf = x_ref[...]                                        # (B, N, F)

    # BatchNorm1d(F), training-mode statistics over (batch, nodes) -> scale/shift fold.
    inv_cnt = 1.0 / float(B * N)
    mean = jnp.sum(jnp.sum(xf, axis=0), axis=0, keepdims=True) * inv_cnt        # (1, F)
    diff = xf - mean
    var = jnp.sum(jnp.sum(diff * diff, axis=0), axis=0, keepdims=True) * inv_cnt
    scale = gamma_ref[...] * lax.rsqrt(var + 1e-5)                              # (1, F)
    scale_ref[...] = scale
    shift_ref[...] = beta_ref[...] - mean * scale

    # normalize_A: L = D @ relu(A) @ D, D = diag(1/sqrt(rowsum(relu(A)) + 1e-10))
    row = lax.broadcasted_iota(jnp.int32, (N, N), 0)
    col = lax.broadcasted_iota(jnp.int32, (N, N), 1)
    eye = (row == col).astype(jnp.float32)

    A = jnp.maximum(A_ref[...], 0.0)
    dinv = lax.rsqrt(jnp.sum(A, axis=1, keepdims=True) + 1e-10)   # (N, 1)
    Dm = eye * dinv                                               # diag(dinv), no transpose
    L = jnp.dot(jnp.dot(Dm, A, preferred_element_type=jnp.float32), Dm,
                preferred_element_type=jnp.float32)

    # generate_cheby_adj: [I, L, L@L, ...]
    cheb_ref[0] = eye
    Tk = L
    for k in range(1, K):
        if k > 1:
            Tk = jnp.dot(Tk, L, preferred_element_type=jnp.float32)
        cheb_ref[k] = Tk


# ---------------------------------------------------------------------------
# Main kernel (per batch tile):
#   act = relu(x_flat @ Mp + bias)      (BN + all K graph convs: one MXU matmul,
#                                        result already (Bt, N*C) lane-major)
#   out = act @ fc_w_pad + fc_b_pad     (128-lane padded output -> unmasked stores)
# ---------------------------------------------------------------------------
def _chebynet_kernel(x_ref, M_ref, bias_ref, fcw_ref, fcb_ref, o_ref):
    act = jnp.dot(x_ref[...], M_ref[...],
                  preferred_element_type=jnp.float32) + bias_ref[...]
    act = jnp.maximum(act, 0.0)                                   # Chebynet output
    o_ref[...] = (jnp.dot(act, fcw_ref[...],
                          preferred_element_type=jnp.float32) + fcb_ref[...])


@functools.partial(jax.jit, static_argnames=("batch_tile",))
def gnn_forward(x, A, W, fc_w, fc_b, gamma, beta, *, batch_tile=None):
    B, N, F = x.shape
    K, _, C = W.shape
    num_out = fc_w.shape[1]
    out_pad = 128                                    # lane-dense output block

    # Single grid step by default (single-TC v5e/v6e; best at small B on v7x too).
    Bt = B if batch_tile is None else batch_tile
    if B % Bt != 0 or Bt <= 0:
        Bt = B

    vmem = pl.BlockSpec(memory_space=pltpu.MemorySpace.VMEM)

    # ---- one-off prep in Pallas: BN fold + normalized L + Chebyshev powers ----
    cheb, scale, shift = pl.pallas_call(
        functools.partial(_prep_kernel, K=K),
        out_shape=(jax.ShapeDtypeStruct((K, N, N), jnp.float32),
                   jax.ShapeDtypeStruct((1, F), jnp.float32),
                   jax.ShapeDtypeStruct((1, F), jnp.float32)),
        in_specs=[vmem] * 4,
        out_specs=(vmem, vmem, vmem),
    )(x, A, gamma, beta)

    # ---- x-independent plumbing, fused by XLA inside this single jit program ----
    # Combined Chebyshev operator: M[(n',f),(n,c)] = sum_k L^k[n,n'] * W_k[f,c]
    M = jnp.einsum('knm,kfc->mfnc', cheb, W).reshape(N * F, N * C)
    scale_col = jnp.tile(scale, (1, N)).reshape(N * F, 1)   # per-(node,feature) scale
    shift_row = jnp.tile(shift, (1, N))                     # (1, N*F)
    Mp = M * scale_col                                      # BN scale folded into operator
    bias = shift_row @ M                                    # BN shift folded into (1, N*C)
    x_flat = x.reshape(B, N * F)                            # row-major reshape in HBM
    fcw_pad = jnp.zeros((N * C, out_pad), jnp.float32).at[:, :num_out].set(fc_w)
    fcb_pad = jnp.zeros((1, out_pad), jnp.float32).at[:, :num_out].set(fc_b)

    out_padded = pl.pallas_call(
        _chebynet_kernel,
        out_shape=jax.ShapeDtypeStruct((B, out_pad), jnp.float32),
        grid_spec=pltpu.PrefetchScalarGridSpec(
            num_scalar_prefetch=0,
            grid=(B // Bt,),
            in_specs=[
                pl.BlockSpec((Bt, N * F), lambda i: (i, 0)),        # x tile
                pl.BlockSpec((N * F, N * C), lambda i: (0, 0)),     # BN-folded cheby op
                pl.BlockSpec((1, N * C), lambda i: (0, 0)),         # BN-folded bias row
                pl.BlockSpec((N * C, out_pad), lambda i: (0, 0)),   # fc weight (padded)
                pl.BlockSpec((1, out_pad), lambda i: (0, 0)),       # fc bias (padded)
            ],
            out_specs=pl.BlockSpec((Bt, out_pad), lambda i: (i, 0)),
        ),
        compiler_params=pltpu.CompilerParams(
            dimension_semantics=("parallel",),        # megacore sharding if grid > 1
            vmem_limit_bytes=32 * 1024 * 1024),
    )(x_flat, Mp, bias, fcw_pad, fcb_pad)

    return out_padded[:, :num_out]


def gnn_reference(x, A, W, fc_w, fc_b, gamma, beta):
    """Pure-JAX reference mirroring the PyTorch forward."""
    B, N, F = x.shape
    K, _, C = W.shape
    mean = jnp.mean(x, axis=(0, 1), keepdims=True)
    var = jnp.mean((x - mean) ** 2, axis=(0, 1), keepdims=True)
    xbn = (x - mean) / jnp.sqrt(var + 1e-5) * gamma + beta
    Ar = jnp.maximum(A, 0.0)
    dinv = 1.0 / jnp.sqrt(jnp.sum(Ar, axis=1) + 1e-10)
    L = Ar * dinv[:, None] * dinv[None, :]
    acc = jnp.zeros((B, N, C), jnp.float32)
    Tk = L
    for k in range(K):
        if k == 0:
            tx = xbn
        else:
            if k > 1:
                Tk = Tk @ L
            tx = jnp.einsum('ij,bjf->bif', Tk, xbn)
        acc = acc + jnp.einsum('bif,fc->bic', tx, W[k])
    acc = jnp.maximum(acc, 0.0)
    return acc.reshape(B, N * C) @ fc_w + fc_b


if __name__ == "__main__":
    # Small shapes consistent with the module: xdim = (B, N, F) with F = 5
    # (forced by nn.BatchNorm1d(5)), K = 3 Chebyshev terms, 32 hidden, 3 classes.
    B, N, F = 16, 16, 5
    K, C = 3, 32
    NUM_CLASSES = 3

    key = jax.random.PRNGKey(0)
    kx, kA, kW, kfw, kfb = jax.random.split(key, 5)

    x = jax.random.normal(kx, (B, N, F), dtype=jnp.float32)

    # nn.Parameter A with kaiming_normal_(mode='fan_in'): std = sqrt(2 / fan_in)
    A = jax.random.normal(kA, (N, N), dtype=jnp.float32) * jnp.sqrt(2.0 / N)

    # GraphConvolution weights (xavier_normal_): std = sqrt(2 / (F + C)), no bias
    W = jax.random.normal(kW, (K, F, C), dtype=jnp.float32) * jnp.sqrt(2.0 / (F + C))

    # fc1 = Linear(N*32, 3): default uniform(-1/sqrt(in), 1/sqrt(in))
    bound = 1.0 / jnp.sqrt(float(N * C))
    fc_w = jax.random.uniform(kfw, (N * C, NUM_CLASSES), jnp.float32, -bound, bound)
    fc_b = jax.random.uniform(kfb, (1, NUM_CLASSES), jnp.float32, -bound, bound)

    # BatchNorm1d(5) default affine params
    gamma = jnp.ones((1, F), jnp.float32)
    beta = jnp.zeros((1, F), jnp.float32)

    out = gnn_forward(x, A, W, fc_w, fc_b, gamma, beta)
    out = jax.block_until_ready(out)

    ref = gnn_reference(x, A, W, fc_w, fc_b, gamma, beta)
    assert out.shape == (B, NUM_CLASSES)
    assert jnp.allclose(out, ref, atol=1e-3, rtol=1e-3), (out, ref)

    print("KERNEL_OK")
</pallas_src>

<mosaic_0001>
module attributes {stable_mosaic.version = 11 : i64} {
  func.func @_prep_kernel(%arg0: memref<16x16x5xf32, #tpu.memory_space<vmem>>, %arg1: memref<16x16xf32, #tpu.memory_space<vmem>>, %arg2: memref<1x5xf32, #tpu.memory_space<vmem>>, %arg3: memref<1x5xf32, #tpu.memory_space<vmem>>, %arg4: memref<3x16x16xf32, #tpu.memory_space<vmem>>, %arg5: memref<1x5xf32, #tpu.memory_space<vmem>>, %arg6: memref<1x5xf32, #tpu.memory_space<vmem>>) attributes {dimension_semantics = [], scalar_prefetch = 0 : i64, scratch_operands = 0 : i64, tpu.core_type = #tpu.core_type<tc>} {
    %c0 = arith.constant 0 : index
    %c0_0 = arith.constant 0 : index
    %c0_1 = arith.constant 0 : index
    %0 = vector.load %arg0[%c0, %c0_0, %c0_1] : memref<16x16x5xf32, #tpu.memory_space<vmem>>, vector<16x16x5xf32>
    %cst = arith.constant dense<0.000000e+00> : vector<16x5xf32>
    %1 = vector.multi_reduction <add>, %0, %cst [0] : vector<16x16x5xf32> to vector<16x5xf32>
    %cst_2 = arith.constant dense<0.000000e+00> : vector<5xf32>
    %2 = vector.multi_reduction <add>, %1, %cst_2 [0] : vector<16x5xf32> to vector<5xf32>
    %3 = vector.shape_cast %2 : vector<5xf32> to vector<1x5xf32>
    %cst_3 = arith.constant 3.906250e-03 : f32
    %4 = vector.broadcast %cst_3 : f32 to vector<1x5xf32>
    %5 = arith.mulf %3, %4 : vector<1x5xf32>
    %6 = vector.shape_cast %5 : vector<1x5xf32> to vector<1x1x5xf32>
    %7 = vector.broadcast %6 : vector<1x1x5xf32> to vector<16x16x5xf32>
    %8 = arith.subf %0, %7 : vector<16x16x5xf32>
    %9 = arith.mulf %8, %8 : vector<16x16x5xf32>
    %cst_4 = arith.constant dense<0.000000e+00> : vector<16x5xf32>
    %10 = vector.multi_reduction <add>, %9, %cst_4 [0] : vector<16x16x5xf32> to vector<16x5xf32>
    %cst_5 = arith.constant dense<0.000000e+00> : vector<5xf32>
    %11 = vector.multi_reduction <add>, %10, %cst_5 [0] : vector<16x5xf32> to vector<5xf32>
    %12 = vector.shape_cast %11 : vector<5xf32> to vector<1x5xf32>
    %cst_6 = arith.constant 3.906250e-03 : f32
    %13 = vector.broadcast %cst_6 : f32 to vector<1x5xf32>
    %14 = arith.mulf %12, %13 : vector<1x5xf32>
    %c0_7 = arith.constant 0 : index
    %c0_8 = arith.constant 0 : index
    %15 = vector.load %arg2[%c0_7, %c0_8] : memref<1x5xf32, #tpu.memory_space<vmem>>, vector<1x5xf32>
    %cst_9 = arith.constant 9.99999974E-6 : f32
    %16 = vector.broadcast %cst_9 : f32 to vector<1x5xf32>
    %17 = arith.addf %14, %16 : vector<1x5xf32>
    %18 = math.rsqrt %17 : vector<1x5xf32>
    %19 = arith.mulf %15, %18 : vector<1x5xf32>
    %c0_10 = arith.constant 0 : index
    %c0_11 = arith.constant 0 : index
    %20 = vector.load %arg5[%c0_10, %c0_11] : memref<1x5xf32, #tpu.memory_space<vmem>>, vector<1x5xf32>
    tpu.vector_store %arg5[%c0_10, %c0_11], %19 {strides = array<i32>} : memref<1x5xf32, #tpu.memory_space<vmem>>, vector<1x5xf32>,
    %c0_12 = arith.constant 0 : index
    %c0_13 = arith.constant 0 : index
    %21 = vector.load %arg3[%c0_12, %c0_13] : memref<1x5xf32, #tpu.memory_space<vmem>>, vector<1x5xf32>
    %22 = arith.mulf %5, %19 : vector<1x5xf32>
    %23 = arith.subf %21, %22 : vector<1x5xf32>
    %c0_14 = arith.constant 0 : index
    %c0_15 = arith.constant 0 : index
    %24 = vector.load %arg6[%c0_14, %c0_15] : memref<1x5xf32, #tpu.memory_space<vmem>>, vector<1x5xf32>
    tpu.vector_store %arg6[%c0_14, %c0_15], %23 {strides = array<i32>} : memref<1x5xf32, #tpu.memory_space<vmem>>, vector<1x5xf32>,
    %25 = tpu.iota {dimensions = array<i32: 0>} : vector<16x16xi32>
    %26 = tpu.iota {dimensions = array<i32: 1>} : vector<16x16xi32>
    %27 = arith.cmpi eq, %25, %26 : vector<16x16xi32>
    %28 = arith.extui %27 : vector<16x16xi1> to vector<16x16xi32>
    %29 = arith.sitofp %28 : vector<16x16xi32> to vector<16x16xf32>
    %c0_16 = arith.constant 0 : index
    %c0_17 = arith.constant 0 : index
    %30 = vector.load %arg1[%c0_16, %c0_17] : memref<16x16xf32, #tpu.memory_space<vmem>>, vector<16x16xf32>
    %cst_18 = arith.constant 0.000000e+00 : f32
    %31 = vector.broadcast %cst_18 : f32 to vector<16x16xf32>
    %32 = arith.maximumf %30, %31 : vector<16x16xf32>
    %cst_19 = arith.constant dense<0.000000e+00> : vector<16xf32>
    %33 = vector.multi_reduction <add>, %32, %cst_19 [1] : vector<16x16xf32> to vector<16xf32>
    %34 = vector.shape_cast %33 : vector<16xf32> to vector<16x1xf32>
    %cst_20 = arith.constant 1.000000e-10 : f32
    %35 = vector.broadcast %cst_20 : f32 to vector<16x1xf32>
    %36 = arith.addf %34, %35 : vector<16x1xf32>
    %37 = math.rsqrt %36 : vector<16x1xf32>
    %38 = vector.broadcast %37 : vector<16x1xf32> to vector<16x16xf32>
    %39 = arith.mulf %29, %38 : vector<16x16xf32>
    %cst_21 = arith.constant dense<0.000000e+00> : vector<16x16xf32>
    %40 = tpu.matmul %39, %32, %cst_21 {dimension_numbers = #tpu.dot_dimension_numbers<[1], [0], [0], [1], [0, 0, 1, 1], [], []>} : vector<16x16xf32>, vector<16x16xf32>, vector<16x16xf32> -> vector<16x16xf32>
    %cst_22 = arith.constant dense<0.000000e+00> : vector<16x16xf32>
    %41 = tpu.matmul %40, %39, %cst_22 {dimension_numbers = #tpu.dot_dimension_numbers<[1], [0], [0], [1], [0, 0, 1, 1], [], []>} : vector<16x16xf32>, vector<16x16xf32>, vector<16x16xf32> -> vector<16x16xf32>
    %c0_23 = arith.constant 0 : index
    %c0_24 = arith.constant 0 : index
    %c0_25 = arith.constant 0 : index
    %42 = vector.load %arg4[%c0_23, %c0_24, %c0_25] : memref<3x16x16xf32, #tpu.memory_space<vmem>>, vector<1x16x16xf32>
    %43 = vector.shape_cast %42 : vector<1x16x16xf32> to vector<16x16xf32>
    %44 = vector.shape_cast %29 : vector<16x16xf32> to vector<1x16x16xf32>
    tpu.vector_store %arg4[%c0_23, %c0_24, %c0_25], %44 {strides = array<i32>} : memref<3x16x16xf32, #tpu.memory_space<vmem>>, vector<1x16x16xf32>,
    %c1 = arith.constant 1 : index
    %c0_26 = arith.constant 0 : index
    %c0_27 = arith.constant 0 : index
    %45 = vector.load %arg4[%c1, %c0_26, %c0_27] : memref<3x16x16xf32, #tpu.memory_space<vmem>>, vector<1x16x16xf32>
    %46 = vector.shape_cast %45 : vector<1x16x16xf32> to vector<16x16xf32>
    %47 = vector.shape_cast %41 : vector<16x16xf32> to vector<1x16x16xf32>
    tpu.vector_store %arg4[%c1, %c0_26, %c0_27], %47 {strides = array<i32>} : memref<3x16x16xf32, #tpu.memory_space<vmem>>, vector<1x16x16xf32>,
    %cst_28 = arith.constant dense<0.000000e+00> : vector<16x16xf32>
    %48 = tpu.matmul %41, %41, %cst_28 {dimension_numbers = #tpu.dot_dimension_numbers<[1], [0], [0], [1], [0, 0, 1, 1], [], []>} : vector<16x16xf32>, vector<16x16xf32>, vector<16x16xf32> -> vector<16x16xf32>
    %c2 = arith.constant 2 : index
    %c0_29 = arith.constant 0 : index
    %c0_30 = arith.constant 0 : index
    %49 = vector.load %arg4[%c2, %c0_29, %c0_30] : memref<3x16x16xf32, #tpu.memory_space<vmem>>, vector<1x16x16xf32>
    %50 = vector.shape_cast %49 : vector<1x16x16xf32> to vector<16x16xf32>
    %51 = vector.shape_cast %48 : vector<16x16xf32> to vector<1x16x16xf32>
    tpu.vector_store %arg4[%c2, %c0_29, %c0_30], %51 {strides = array<i32>} : memref<3x16x16xf32, #tpu.memory_space<vmem>>, vector<1x16x16xf32>,
    return
  }
}

module attributes {stable_mosaic.version = 11 : i64} {
  func.func @_chebynet_kernel(%arg0: i32, %arg1: memref<16x80xf32, #tpu.memory_space<vmem>>, %arg2: memref<80x512xf32, #tpu.memory_space<vmem>>, %arg3: memref<1x512xf32, #tpu.memory_space<vmem>>, %arg4: memref<512x128xf32, #tpu.memory_space<vmem>>, %arg5: memref<1x128xf32, #tpu.memory_space<vmem>>, %arg6: memref<16x128xf32, #tpu.memory_space<vmem>>) attributes {dimension_semantics = [#tpu.dimension_semantics<parallel>], iteration_bounds = array<i64: 1>, scalar_prefetch = 0 : i64, scratch_operands = 0 : i64, tpu.core_type = #tpu.core_type<tc>, window_params = [{transform_indices = @transform_0, window_bounds = array<i64: 16, 80>}, {pipeline_mode = #tpu.pipeline_mode<synchronous>, transform_indices = @transform_1, window_bounds = array<i64: 80, 512>}, {pipeline_mode = #tpu.pipeline_mode<synchronous>, transform_indices = @transform_2, window_bounds = array<i64: 1, 512>}, {pipeline_mode = #tpu.pipeline_mode<synchronous>, transform_indices = @transform_3, window_bounds = array<i64: 512, 128>}, {pipeline_mode = #tpu.pipeline_mode<synchronous>, transform_indices = @transform_4, window_bounds = array<i64: 1, 128>}, {transform_indices = @transform_5, window_bounds = array<i64: 16, 128>}]} {
    %c0 = arith.constant 0 : index
    %c0_0 = arith.constant 0 : index
    %0 = vector.load %arg1[%c0, %c0_0] : memref<16x80xf32, #tpu.memory_space<vmem>>, vector<16x80xf32>
    %c0_1 = arith.constant 0 : index
    %c0_2 = arith.constant 0 : index
    %1 = vector.load %arg2[%c0_1, %c0_2] : memref<80x512xf32, #tpu.memory_space<vmem>>, vector<80x512xf32>
    %cst = arith.constant dense<0.000000e+00> : vector<16x512xf32>
    %2 = tpu.matmul %0, %1, %cst {dimension_numbers = #tpu.dot_dimension_numbers<[1], [0], [0], [1], [0, 0, 1, 1], [], []>} : vector<16x80xf32>, vector<80x512xf32>, vector<16x512xf32> -> vector<16x512xf32>
    %c0_3 = arith.constant 0 : index
    %c0_4 = arith.constant 0 : index
    %3 = vector.load %arg3[%c0_3, %c0_4] : memref<1x512xf32, #tpu.memory_space<vmem>>, vector<1x512xf32>
    %4 = vector.broadcast %3 : vector<1x512xf32> to vector<16x512xf32>
    %5 = arith.addf %2, %4 : vector<16x512xf32>
    %cst_5 = arith.constant 0.000000e+00 : f32
    %6 = vector.broadcast %cst_5 : f32 to vector<16x512xf32>
    %7 = arith.maximumf %5, %6 : vector<16x512xf32>
    %c0_6 = arith.constant 0 : index
    %c0_7 = arith.constant 0 : index
    %8 = vector.load %arg4[%c0_6, %c0_7] : memref<512x128xf32, #tpu.memory_space<vmem>>, vector<512x128xf32>
    %cst_8 = arith.constant dense<0.000000e+00> : vector<16x128xf32>
    %9 = tpu.matmul %7, %8, %cst_8 {dimension_numbers = #tpu.dot_dimension_numbers<[1], [0], [0], [1], [0, 0, 1, 1], [], []>} : vector<16x512xf32>, vector<512x128xf32>, vector<16x128xf32> -> vector<16x128xf32>
    %c0_9 = arith.constant 0 : index
    %c0_10 = arith.constant 0 : index
    %10 = vector.load %arg5[%c0_9, %c0_10] : memref<1x128xf32, #tpu.memory_space<vmem>>, vector<1x128xf32>
    %11 = vector.broadcast %10 : vector<1x128xf32> to vector<16x128xf32>
    %12 = arith.addf %9, %11 : vector<16x128xf32>
    %c0_11 = arith.constant 0 : index
    %c0_12 = arith.constant 0 : index
    %13 = vector.load %arg6[%c0_11, %c0_12] : memref<16x128xf32, #tpu.memory_space<vmem>>, vector<16x128xf32>
    tpu.vector_store %arg6[%c0_11, %c0_12], %12 {strides = array<i32>} : memref<16x128xf32, #tpu.memory_space<vmem>>, vector<16x128xf32>,
    return
  }
  func.func @transform_0(%arg0: i32) -> (i32, i32) {
    %c0_i32 = arith.constant 0 : i32
    %c0_i32_0 = arith.constant 0 : i32
    return %arg0, %c0_i32 : i32, i32
  }
  func.func @transform_1(%arg0: i32) -> (i32, i32) {
    %c0_i32 = arith.constant 0 : i32
    %c0_i32_0 = arith.constant 0 : i32
    %c0_i32_1 = arith.constant 0 : i32
    return %c0_i32, %c0_i32_0 : i32, i32
  }
  func.func @transform_2(%arg0: i32) -> (i32, i32) {
    %c0_i32 = arith.constant 0 : i32
    %c0_i32_0 = arith.constant 0 : i32
    %c0_i32_1 = arith.constant 0 : i32
    return %c0_i32, %c0_i32_0 : i32, i32
  }
  func.func @transform_3(%arg0: i32) -> (i32, i32) {
    %c0_i32 = arith.constant 0 : i32
    %c0_i32_0 = arith.constant 0 : i32
    %c0_i32_1 = arith.constant 0 : i32
    return %c0_i32, %c0_i32_0 : i32, i32
  }
  func.func @transform_4(%arg0: i32) -> (i32, i32) {
    %c0_i32 = arith.constant 0 : i32
    %c0_i32_0 = arith.constant 0 : i32
    %c0_i32_1 = arith.constant 0 : i32
    return %c0_i32, %c0_i32_0 : i32, i32
  }
  func.func @transform_5(%arg0: i32) -> (i32, i32) {
    %c0_i32 = arith.constant 0 : i32
    %c0_i32_0 = arith.constant 0 : i32
    return %arg0, %c0_i32 : i32, i32
  }
}

</mosaic_0001>

<llo_original>
// kernel: gnn_forward.2
$region0: #{gnn_forward.2}
  #allocation0 [shape = 'u32[]', space=smem, size = 0x4, offset = 0x4, fixed_abs, tag = 'smem constant byte address 0x4 - core index']
  #allocation1 [shape = 'u32[144,128]{1,0:T(1,128)}', space=vmem, size = 0x12000, scoped, tag = 'internal scratch']
  %s0 = inlined_call_operand.vmem [shape: f32[16,16,5], index: 0, kind: input, shape index: {}]
  %s1 = inlined_call_operand.vmem [shape: f32[16,16], index: 1, kind: input, shape index: {}]
  %s2 = inlined_call_operand.vmem [shape: f32[1,5], index: 2, kind: input, shape index: {}]
  %s3 = inlined_call_operand.vmem [shape: f32[1,5], index: 3, kind: input, shape index: {}]
  %s4 = inlined_call_operand.vmem [shape: f32[3,16,16], index: 4, kind: output, shape index: {0}]
  %s5 = inlined_call_operand.vmem [shape: f32[1,5], index: 5, kind: output, shape index: {1}]
  %s6 = inlined_call_operand.vmem [shape: f32[1,5], index: 6, kind: output, shape index: {2}]
  %7 = xla_tuple %s4, %s5, %s6
  %s8 = sld [smem:[#allocation0]]
  $region42: #{gnn_forward.2} parent=0
    _
  %s10 = ssub.s32 1, %s8
  %s11 = scalar_select 0, %s10, %s8
  // Predicated region
  $region2: #{gnn_forward.2} parent=0 // pred_check
    _
  $region3: #{gnn_forward.2} parent=0 // pred_check_branch
    %13 = sbr.rel (0) target = $region5
  $region4: #{gnn_forward.2} parent=0 // pred_region
    _
  $region5: #{gnn_forward.2} parent=0 // pred_fallthru
    _
  // Predicated region
  $region6: #{gnn_forward.2} parent=0 // pred_check
    _
  $region7: #{gnn_forward.2} parent=0 // pred_check_branch
    %15 = sbr.rel (0) target = $region9
  $region8: #{gnn_forward.2} parent=0 // pred_region
    _
  $region9: #{gnn_forward.2} parent=0 // pred_fallthru
    _
  // Predicated region
  $region10: #{gnn_forward.2} parent=0 // pred_check
    _
  $region11: #{gnn_forward.2} parent=0 // pred_check_branch
    %17 = sbr.rel (0) target = $region13
  $region12: #{gnn_forward.2} parent=0 // pred_region
    _
  $region13: #{gnn_forward.2} parent=0 // pred_fallthru
    _
  // Predicated region
  $region14: #{gnn_forward.2} parent=0 // pred_check
    _
  $region15: #{gnn_forward.2} parent=0 // pred_check_branch
    %19 = sbr.rel (0) target = $region17
  $region16: #{gnn_forward.2} parent=0 // pred_region
    _
  $region17: #{gnn_forward.2} parent=0 // pred_fallthru
    _
  %v20 = vld [vmem:[%s0] sm:$0xff]
  %v21 = vld [vmem:[%s0 + $0x8] sm:$0xff]
  %v22 = vld [vmem:[%s0 + $0x10] sm:$0xff]
  %v23 = vld [vmem:[%s0 + $0x18] sm:$0xff]
  %v24 = vld [vmem:[%s0 + $0x20] sm:$0xff]
  %v25 = vld [vmem:[%s0 + $0x28] sm:$0xff]
  %v26 = vld [vmem:[%s0 + $0x30] sm:$0xff]
  %v27 = vld [vmem:[%s0 + $0x38] sm:$0xff]
  %v28 = vld [vmem:[%s0 + $0x40] sm:$0xff]
  %v29 = vld [vmem:[%s0 + $0x48] sm:$0xff]
  %v30 = vld [vmem:[%s0 + $0x50] sm:$0xff]
  %v31 = vld [vmem:[%s0 + $0x58] sm:$0xff]
  %v32 = vld [vmem:[%s0 + $0x60] sm:$0xff]
  %v33 = vld [vmem:[%s0 + $0x68] sm:$0xff]
  %v34 = vld [vmem:[%s0 + $0x70] sm:$0xff]
  %v35 = vld [vmem:[%s0 + $0x78] sm:$0xff]
  %v36 = vld [vmem:[%s0 + $0x80] sm:$0xff]
  %v37 = vld [vmem:[%s0 + $0x88] sm:$0xff]
  %v38 = vld [vmem:[%s0 + $0x90] sm:$0xff]
  %v39 = vld [vmem:[%s0 + $0x98] sm:$0xff]
  %v40 = vld [vmem:[%s0 + $0xa0] sm:$0xff]
  %v41 = vld [vmem:[%s0 + $0xa8] sm:$0xff]
  %v42 = vld [vmem:[%s0 + $0xb0] sm:$0xff]
  %v43 = vld [vmem:[%s0 + $0xb8] sm:$0xff]
  %v44 = vld [vmem:[%s0 + $0xc0] sm:$0xff]
  %v45 = vld [vmem:[%s0 + $0xc8] sm:$0xff]
  %v46 = vld [vmem:[%s0 + $0xd0] sm:$0xff]
  %v47 = vld [vmem:[%s0 + $0xd8] sm:$0xff]
  %v48 = vld [vmem:[%s0 + $0xe0] sm:$0xff]
  %v49 = vld [vmem:[%s0 + $0xe8] sm:$0xff]
  %v50 = vld [vmem:[%s0 + $0xf0] sm:$0xff]
  %v51 = vld [vmem:[%s0 + $0xf8] sm:$0xff]
  %vm52 = vcmask 39936
  %v53 = vsel %vm52, %v20, 0.0
  %v54 = vsel %vm52, %v22, 0.0
  %v55 = vadd.f32 %v53, %v54
  %v56 = vsel %vm52, %v24, 0.0
  %v57 = vadd.f32 %v55, %v56
  %v58 = vsel %vm52, %v26, 0.0
  %v59 = vadd.f32 %v57, %v58
  %v60 = vsel %vm52, %v28, 0.0
  %v61 = vadd.f32 %v59, %v60
  %v62 = vsel %vm52, %v30, 0.0
  %v63 = vadd.f32 %v61, %v62
  %v64 = vsel %vm52, %v32, 0.0
  %v65 = vadd.f32 %v63, %v64
  %v66 = vsel %vm52, %v34, 0.0
  %v67 = vadd.f32 %v65, %v66
  %v68 = vsel %vm52, %v36, 0.0
  %v69 = vadd.f32 %v67, %v68
  %v70 = vsel %vm52, %v38, 0.0
  %v71 = vadd.f32 %v69, %v70
  %v72 = vsel %vm52, %v40, 0.0
  %v73 = vadd.f32 %v71, %v72
  %v74 = vsel %vm52, %v42, 0.0
  %v75 = vadd.f32 %v73, %v74
  %v76 = vsel %vm52, %v44, 0.0
  %v77 = vadd.f32 %v75, %v76
  %v78 = vsel %vm52, %v46, 0.0
  %v79 = vadd.f32 %v77, %v78
  %v80 = vsel %vm52, %v48, 0.0
  %v81 = vadd.f32 %v79, %v80
  %v82 = vsel %vm52, %v50, 0.0
  %v83 = vadd.f32 %v81, %v82
  %v84 = vsel %vm52, %v21, 0.0
  %v85 = vsel %vm52, %v23, 0.0
  %v86 = vadd.f32 %v84, %v85
  %v87 = vsel %vm52, %v25, 0.0
  %v88 = vadd.f32 %v86, %v87
  %v89 = vsel %vm52, %v27, 0.0
  %v90 = vadd.f32 %v88, %v89
  %v91 = vsel %vm52, %v29, 0.0
  %v92 = vadd.f32 %v90, %v91
  %v93 = vsel %vm52, %v31, 0.0
  %v94 = vadd.f32 %v92, %v93
  %v95 = vsel %vm52, %v33, 0.0
  %v96 = vadd.f32 %v94, %v95
  %v97 = vsel %vm52, %v35, 0.0
  %v98 = vadd.f32 %v96, %v97
  %v99 = vsel %vm52, %v37, 0.0
  %v100 = vadd.f32 %v98, %v99
  %v101 = vsel %vm52, %v39, 0.0
  %v102 = vadd.f32 %v100, %v101
  %v103 = vsel %vm52, %v41, 0.0
  %v104 = vadd.f32 %v102, %v103
  %v105 = vsel %vm52, %v43, 0.0
  %v106 = vadd.f32 %v104, %v105
  %v107 = vsel %vm52, %v45, 0.0
  %v108 = vadd.f32 %v106, %v107
  %v109 = vsel %vm52, %v47, 0.0
  %v110 = vadd.f32 %v108, %v109
  %v111 = vsel %vm52, %v49, 0.0
  %v112 = vadd.f32 %v110, %v111
  %v113 = vsel %vm52, %v51, 0.0
  %v114 = vadd.f32 %v112, %v113
  %v115 = vsel %vm52, %v83, 0.0
  %v116 = vsel %vm52, %v114, 0.0
  %v117 = vadd.f32 %v115, %v116
  %v118 = vrot.slane %v117, 4
  %v119 = vadd.f32 %v117, %v118
  %v120 = vrot.slane %v119, 2
  %v121 = vadd.f32 %v119, %v120
  %v122 = vrot.slane %v121, 1
  %v123 = vadd.f32 %v121, %v122
  %v124 = vmul.f32 %v123, 0.00390625
  %v125 = vsub.f32 %v20, %v124
  %v126 = vsub.f32 %v21, %v124
  %v127 = vsub.f32 %v22, %v124
  %v128 = vsub.f32 %v23, %v124
  %v129 = vsub.f32 %v24, %v124
  %v130 = vsub.f32 %v25, %v124
  %v131 = vsub.f32 %v26, %v124
  %v132 = vsub.f32 %v27, %v124
  %v133 = vsub.f32 %v28, %v124
  %v134 = vsub.f32 %v29, %v124
  %v135 = vsub.f32 %v30, %v124
  %v136 = vsub.f32 %v31, %v124
  %v137 = vsub.f32 %v32, %v124
  %v138 = vsub.f32 %v33, %v124
  %v139 = vsub.f32 %v34, %v124
  %v140 = vsub.f32 %v35, %v124
  %v141 = vsub.f32 %v36, %v124
  %v142 = vsub.f32 %v37, %v124
  %v143 = vsub.f32 %v38, %v124
  %v144 = vsub.f32 %v39, %v124
  %v145 = vsub.f32 %v40, %v124
  %v146 = vsub.f32 %v41, %v124
  %v147 = vsub.f32 %v42, %v124
  %v148 = vsub.f32 %v43, %v124
  %v149 = vsub.f32 %v44, %v124
  %v150 = vsub.f32 %v45, %v124
  %v151 = vsub.f32 %v46, %v124
  %v152 = vsub.f32 %v47, %v124
  %v153 = vsub.f32 %v48, %v124
  %v154 = vsub.f32 %v49, %v124
  %v155 = vsub.f32 %v50, %v124
  %v156 = vsub.f32 %v51, %v124
  %v157 = vmul.f32 %v125, %v125
  %v158 = vmul.f32 %v126, %v126
  %v159 = vmul.f32 %v127, %v127
  %v160 = vmul.f32 %v128, %v128
  %v161 = vmul.f32 %v129, %v129
  %v162 = vmul.f32 %v130, %v130
  %v163 = vmul.f32 %v131, %v131
  %v164 = vmul.f32 %v132, %v132
  %v165 = vmul.f32 %v133, %v133
  %v166 = vmul.f32 %v134, %v134
  %v167 = vmul.f32 %v135, %v135
  %v168 = vmul.f32 %v136, %v136
  %v169 = vmul.f32 %v137, %v137
  %v170 = vmul.f32 %v138, %v138
  %v171 = vmul.f32 %v139, %v139
  %v172 = vmul.f32 %v140, %v140
  %v173 = vmul.f32 %v141, %v141
  %v174 = vmul.f32 %v142, %v142
  %v175 = vmul.f32 %v143, %v143
  %v176 = vmul.f32 %v144, %v144
  %v177 = vmul.f32 %v145, %v145
  %v178 = vmul.f32 %v146, %v146
  %v179 = vmul.f32 %v147, %v147
  %v180 = vmul.f32 %v148, %v148
  %v181 = vmul.f32 %v149, %v149
  %v182 = vmul.f32 %v150, %v150
  %v183 = vmul.f32 %v151, %v151
  %v184 = vmul.f32 %v152, %v152
  %v185 = vmul.f32 %v153, %v153
  %v186 = vmul.f32 %v154, %v154
  %v187 = vmul.f32 %v155, %v155
  %v188 = vmul.f32 %v156, %v156
  %v189 = vsel %vm52, %v157, 0.0
  %v190 = vsel %vm52, %v159, 0.0
  %v191 = vadd.f32 %v189, %v190
  %v192 = vsel %vm52, %v161, 0.0
  %v193 = vadd.f32 %v191, %v192
  %v194 = vsel %vm52, %v163, 0.0
  %v195 = vadd.f32 %v193, %v194
  %v196 = vsel %vm52, %v165, 0.0
  %v197 = vadd.f32 %v195, %v196
  %v198 = vsel %vm52, %v167, 0.0
  %v199 = vadd.f32 %v197, %v198
  %v200 = vsel %vm52, %v169, 0.0
  %v201 = vadd.f32 %v199, %v200
  %v202 = vsel %vm52, %v171, 0.0
  %v203 = vadd.f32 %v201, %v202
  %v204 = vsel %vm52, %v173, 0.0
  %v205 = vadd.f32 %v203, %v204
  %v206 = vsel %vm52, %v175, 0.0
  %v207 = vadd.f32 %v205, %v206
  %v208 = vsel %vm52, %v177, 0.0
  %v209 = vadd.f32 %v207, %v208
  %v210 = vsel %vm52, %v179, 0.0
  %v211 = vadd.f32 %v209, %v210
  %v212 = vsel %vm52, %v181, 0.0
  %v213 = vadd.f32 %v211, %v212
  %v214 = vsel %vm52, %v183, 0.0
  %v215 = vadd.f32 %v213, %v214
  %v216 = vsel %vm52, %v185, 0.0
  %v217 = vadd.f32 %v215, %v216
  %v218 = vsel %vm52, %v187, 0.0
  %v219 = vadd.f32 %v217, %v218
  %v220 = vsel %vm52, %v158, 0.0
  %v221 = vsel %vm52, %v160, 0.0
  %v222 = vadd.f32 %v220, %v221
  %v223 = vsel %vm52, %v162, 0.0
  %v224 = vadd.f32 %v222, %v223
  %v225 = vsel %vm52, %v164, 0.0
  %v226 = vadd.f32 %v224, %v225
  %v227 = vsel %vm52, %v166, 0.0
  %v228 = vadd.f32 %v226, %v227
  %v229 = vsel %vm52, %v168, 0.0
  %v230 = vadd.f32 %v228, %v229
  %v231 = vsel %vm52, %v170, 0.0
  %v232 = vadd.f32 %v230, %v231
  %v233 = vsel %vm52, %v172, 0.0
  %v234 = vadd.f32 %v232, %v233
  %v235 = vsel %vm52, %v174, 0.0
  %v236 = vadd.f32 %v234, %v235
  %v237 = vsel %vm52, %v176, 0.0
  %v238 = vadd.f32 %v236, %v237
  %v239 = vsel %vm52, %v178, 0.0
  %v240 = vadd.f32 %v238, %v239
  %v241 = vsel %vm52, %v180, 0.0
  %v242 = vadd.f32 %v240, %v241
  %v243 = vsel %vm52, %v182, 0.0
  %v244 = vadd.f32 %v242, %v243
  %v245 = vsel %vm52, %v184, 0.0
  %v246 = vadd.f32 %v244, %v245
  %v247 = vsel %vm52, %v186, 0.0
  %v248 = vadd.f32 %v246, %v247
  %v249 = vsel %vm52, %v188, 0.0
  %v250 = vadd.f32 %v248, %v249
  %v251 = vsel %vm52, %v219, 0.0
  %v252 = vsel %vm52, %v250, 0.0
  %v253 = vadd.f32 %v251, %v252
  %v254 = vrot.slane %v253, 4
  %v255 = vadd.f32 %v253, %v254
  %v256 = vrot.slane %v255, 2
  %v257 = vadd.f32 %v255, %v256
  %v258 = vrot.slane %v257, 1
  %v259 = vadd.f32 %v257, %v258
  %v260 = vmul.f32 %v259, 0.00390625
  %v261 = vld [vmem:[%s2] sm:$0x1]
  %v262 = vadd.f32 %v260, 1e-05
  %v263 = vrsqrt.pop %v262
  %v264 = vmul.f32 %v261, %v263
  %vm265 = vcmask 32768
  %266 = vst.msk [vmem:[%s5] sm:$0x1] %vm265, %v264
  %v267 = vld [vmem:[%s3] sm:$0x1]
  %v268 = vmul.f32 %v124, %v264
  %v269 = vsub.f32 %v267, %v268
  %270 = vst.msk [vmem:[%s6] sm:$0x1] %vm265, %v269
  %v271 = vlaneseq
  %v272 = vshrl.u32 %v271, 7
  %v273 = vadd.s32 %v272, 8
  %v274 = vlaneseq
  %v275 = vand.u32 %v274, 127
  %vm276 = vcmp.eq.s32.totalorder %v272, %v275
  %vm277 = vcmp.eq.s32.totalorder %v273, %v275
  %v278 = vsel %vm276, 1, 0
  %v279 = vsel %vm277, 1, 0
  %v280 = vcvt.s32.f32 %v278
  %v281 = vcvt.s32.f32 %v279
  %v282 = vld [vmem:[%s1] sm:$0xff]
  %v283 = vld [vmem:[%s1 + $0x8] sm:$0xff]
  %v284 = vmax.f32 %v282, 0.0
  %v285 = vmax.f32 %v283, 0.0
  %vm286 = vcmask 130048
  %v287 = vsel %vm286, %v284, 0.0
  %288 = vadd.xlane.f32.xlu0 %v287
  %v289 = vpop.xlane.xlu0 %288
  %v290 = vsel %vm286, %v285, 0.0
  %291 = vadd.xlane.f32.xlu0 %v290
  %v292 = vpop.xlane.xlu0 %291
  %v293 = vadd.f32 %v289, 1e-10
  %v294 = vadd.f32 %v292, 1e-10
  %v295 = vrsqrt.pop %v293
  %v296 = vrsqrt.pop %v294
  %v297 = vmul.f32 %v280, %v295
  %v298 = vmul.f32 %v281, %v296
  %v300 = vsel %vm286, %v297, 0
  %v303 = vsel %vm286, %v298, 0
  %305 = vmatprep.subr.mxu0 0.0
  %306 = vmatpush1.msra.mxu0 %v284
  %307 = vmatprep.subr.mxu0 0.0
  %308 = vmatpush1.msra.mxu0 %v285
  %309 = vmatprep.subr.mxu0 0.0
  %310 = vmatpush1.msra.mxu0 0.0
  %311 = vmatprep.subr.mxu0 0.0
  %312 = vmatpush1.msra.mxu0 0.0
  %313 = vmatprep.subr.mxu0 0.0
  %314 = vmatpush1.msra.mxu0 0.0
  %315 = vmatprep.subr.mxu0 0.0
  %316 = vmatpush1.msra.mxu0 0.0
  %317 = vmatprep.subr.mxu0 0.0
  %318 = vmatpush1.msra.mxu0 0.0
  %319 = vmatprep.subr.mxu0 0.0
  %320 = vmatpush1.msra.mxu0 0.0
  %321 = vmatprep.subr.mxu0 0.0
  %322 = vmatpush1.msra.mxu0 0.0
  %323 = vmatprep.subr.mxu0 0.0
  %324 = vmatpush1.msra.mxu0 0.0
  %325 = vmatprep.subr.mxu0 0.0
  %326 = vmatpush1.msra.mxu0 0.0
  %327 = vmatprep.subr.mxu0 0.0
  %328 = vmatpush1.msra.mxu0 0.0
  %329 = vmatprep.subr.mxu0 0.0
  %330 = vmatpush1.msra.mxu0 0.0
  %331 = vmatprep.subr.mxu0 0.0
  %332 = vmatpush1.msra.mxu0 0.0
  %333 = vmatprep.subr.mxu0 0.0
  %334 = vmatpush1.msra.mxu0 0.0
  %335 = vmatprep.subr.mxu0 0.0
  %336 = vmatpush1.msra.mxu0 0.0
  %337 = vmatprep.subr.mxu0 0.0
  %338 = vmatpush1.msra.mxu0 0.0
  %339 = vmatprep.subr.mxu0 0.0
  %340 = vmatpush1.msra.mxu0 0.0
  %341 = vmatprep.subr.mxu0 0.0
  %342 = vmatpush1.msra.mxu0 0.0
  %343 = vmatprep.subr.mxu0 0.0
  %344 = vmatpush1.msra.mxu0 0.0
  %345 = vmatprep.subr.mxu0 0.0
  %346 = vmatpush1.msra.mxu0 0.0
  %347 = vmatprep.subr.mxu0 0.0
  %348 = vmatpush1.msra.mxu0 0.0
  %349 = vmatprep.subr.mxu0 0.0
  %350 = vmatpush1.msra.mxu0 0.0
  %351 = vmatprep.subr.mxu0 0.0
  %352 = vmatpush1.msra.mxu0 0.0
  %353 = vmatprep.subr.mxu0 0.0
  %354 = vmatpush1.msra.mxu0 0.0
  %355 = vmatprep.subr.mxu0 0.0
  %356 = vmatpush1.msra.mxu0 0.0
  %357 = vmatprep.subr.mxu0 0.0
  %358 = vmatpush1.msra.mxu0 0.0
  %359 = vmatprep.subr.mxu0 0.0
  %360 = vmatpush1.msra.mxu0 0.0
  %361 = vmatprep.subr.mxu0 0.0
  %362 = vmatpush1.msra.mxu0 0.0
  %363 = vmatprep.subr.mxu0 0.0
  %364 = vmatpush1.msra.mxu0 0.0
  %365 = vmatprep.subr.mxu0 0.0
  %366 = vmatpush1.msra.mxu0 0.0
  %367 = vmatprep.subr.mxu0 0.0
  %368 = vmatpush1.msra.mxu0 0.0
  %369 = vmatprep.mubr.f32.mxu0 0.0
  %370 = vmatmul.mubr.f32.gmra.mrb[0].mxu0 %v300
  %v371 = vpop.f32.mrb[0].mxu0
  %v372 = vadd.f32 0.0, %v371
  %v373 = vpop.f32.mrb[0].mxu0
  %374 = vmatprep.mubr.f32.mxu0 0.0
  %375 = vmatmul.mubr.f32.gmra.mrb[0].mxu0 %v303
  %v376 = vpop.f32.mrb[0].mxu0
  %v377 = vadd.f32 0.0, %v376
  %v378 = vpop.f32.mrb[0].mxu0
  %379 = vdwg.mxu0
  %v381 = vsel %vm286, %v372, 0
  %v384 = vsel %vm286, %v377, 0
  %386 = vmatprep.subr.mxu0 0.0
  %387 = vmatpush1.msra.mxu0 %v297
  %388 = vmatprep.subr.mxu0 0.0
  %389 = vmatpush1.msra.mxu0 %v298
  %390 = vmatprep.subr.mxu0 0.0
  %391 = vmatpush1.msra.mxu0 0.0
  %392 = vmatprep.subr.mxu0 0.0
  %393 = vmatpush1.msra.mxu0 0.0
  %394 = vmatprep.subr.mxu0 0.0
  %395 = vmatpush1.msra.mxu0 0.0
  %396 = vmatprep.subr.mxu0 0.0
  %397 = vmatpush1.msra.mxu0 0.0
  %398 = vmatprep.subr.mxu0 0.0
  %399 = vmatpush1.msra.mxu0 0.0
  %400 = vmatprep.subr.mxu0 0.0
  %401 = vmatpush1.msra.mxu0 0.0
  %402 = vmatprep.subr.mxu0 0.0
  %403 = vmatpush1.msra.mxu0 0.0
  %404 = vmatprep.subr.mxu0 0.0
  %405 = vmatpush1.msra.mxu0 0.0
  %406 = vmatprep.subr.mxu0 0.0
  %407 = vmatpush1.msra.mxu0 0.0
  %408 = vmatprep.subr.mxu0 0.0
  %409 = vmatpush1.msra.mxu0 0.0
  %410 = vmatprep.subr.mxu0 0.0
  %411 = vmatpush1.msra.mxu0 0.0
  %412 = vmatprep.subr.mxu0 0.0
  %413 = vmatpush1.msra.mxu0 0.0
  %414 = vmatprep.subr.mxu0 0.0
  %415 = vmatpush1.msra.mxu0 0.0
  %416 = vmatprep.subr.mxu0 0.0
  %417 = vmatpush1.msra.mxu0 0.0
  %418 = vmatprep.subr.mxu0 0.0
  %419 = vmatpush1.msra.mxu0 0.0
  %420 = vmatprep.subr.mxu0 0.0
  %421 = vmatpush1.msra.mxu0 0.0
  %422 = vmatprep.subr.mxu0 0.0
  %423 = vmatpush1.msra.mxu0 0.0
  %424 = vmatprep.subr.mxu0 0.0
  %425 = vmatpush1.msra.mxu0 0.0
  %426 = vmatprep.subr.mxu0 0.0
  %427 = vmatpush1.msra.mxu0 0.0
  %428 = vmatprep.subr.mxu0 0.0
  %429 = vmatpush1.msra.mxu0 0.0
  %430 = vmatprep.subr.mxu0 0.0
  %431 = vmatpush1.msra.mxu0 0.0
  %432 = vmatprep.subr.mxu0 0.0
  %433 = vmatpush1.msra.mxu0 0.0
  %434 = vmatprep.subr.mxu0 0.0
  %435 = vmatpush1.msra.mxu0 0.0
  %436 = vmatprep.subr.mxu0 0.0
  %437 = vmatpush1.msra.mxu0 0.0
  %438 = vmatprep.subr.mxu0 0.0
  %439 = vmatpush1.msra.mxu0 0.0
  %440 = vmatprep.subr.mxu0 0.0
  %441 = vmatpush1.msra.mxu0 0.0
  %442 = vmatprep.subr.mxu0 0.0
  %443 = vmatpush1.msra.mxu0 0.0
  %444 = vmatprep.subr.mxu0 0.0
  %445 = vmatpush1.msra.mxu0 0.0
  %446 = vmatprep.subr.mxu0 0.0
  %447 = vmatpush1.msra.mxu0 0.0
  %448 = vmatprep.subr.mxu0 0.0
  %449 = vmatpush1.msra.mxu0 0.0
  %450 = vmatprep.mubr.f32.mxu0 0.0
  %451 = vmatmul.mubr.f32.gmra.mrb[0].mxu0 %v381
  %v452 = vpop.f32.mrb[0].mxu0
  %v453 = vadd.f32 0.0, %v452
  %v454 = vpop.f32.mrb[0].mxu0
  %455 = vmatprep.mubr.f32.mxu0 0.0
  %456 = vmatmul.mubr.f32.gmra.mrb[0].mxu0 %v384
  %v457 = vpop.f32.mrb[0].mxu0
  %v458 = vadd.f32 0.0, %v457
  %v459 = vpop.f32.mrb[0].mxu0
  %460 = vdwg.mxu0
  %461 = vst.msk [vmem:[%s4] sm:$0xff] %vm286, %v280
  %462 = vst.msk [vmem:[%s4 + $0x8] sm:$0xff] %vm286, %v281
  %s463 = scalar_lea.vmem %s4, 16
  %464 = vst.msk [vmem:[%s463] sm:$0xff] %vm286, %v453
  %465 = vst.msk [vmem:[%s463 + $0x8] sm:$0xff] %vm286, %v458
  %v467 = vsel %vm286, %v453, 0
  %v470 = vsel %vm286, %v458, 0
  %472 = vmatprep.subr.mxu0 0.0
  %473 = vmatpush1.msra.mxu0 %v453
  %474 = vmatprep.subr.mxu0 0.0
  %475 = vmatpush1.msra.mxu0 %v458
  %476 = vmatprep.subr.mxu0 0.0
  %477 = vmatpush1.msra.mxu0 0.0
  %478 = vmatprep.subr.mxu0 0.0
  %479 = vmatpush1.msra.mxu0 0.0
  %480 = vmatprep.subr.mxu0 0.0
  %481 = vmatpush1.msra.mxu0 0.0
  %482 = vmatprep.subr.mxu0 0.0
  %483 = vmatpush1.msra.mxu0 0.0
  %484 = vmatprep.subr.mxu0 0.0
  %485 = vmatpush1.msra.mxu0 0.0
  %486 = vmatprep.subr.mxu0 0.0
  %487 = vmatpush1.msra.mxu0 0.0
  %488 = vmatprep.subr.mxu0 0.0
  %489 = vmatpush1.msra.mxu0 0.0
  %490 = vmatprep.subr.mxu0 0.0
  %491 = vmatpush1.msra.mxu0 0.0
  %492 = vmatprep.subr.mxu0 0.0
  %493 = vmatpush1.msra.mxu0 0.0
  %494 = vmatprep.subr.mxu0 0.0
  %495 = vmatpush1.msra.mxu0 0.0
  %496 = vmatprep.subr.mxu0 0.0
  %497 = vmatpush1.msra.mxu0 0.0
  %498 = vmatprep.subr.mxu0 0.0
  %499 = vmatpush1.msra.mxu0 0.0
  %500 = vmatprep.subr.mxu0 0.0
  %501 = vmatpush1.msra.mxu0 0.0
  %502 = vmatprep.subr.mxu0 0.0
  %503 = vmatpush1.msra.mxu0 0.0
  %504 = vmatprep.subr.mxu0 0.0
  %505 = vmatpush1.msra.mxu0 0.0
  %506 = vmatprep.subr.mxu0 0.0
  %507 = vmatpush1.msra.mxu0 0.0
  %508 = vmatprep.subr.mxu0 0.0
  %509 = vmatpush1.msra.mxu0 0.0
  %510 = vmatprep.subr.mxu0 0.0
  %511 = vmatpush1.msra.mxu0 0.0
  %512 = vmatprep.subr.mxu0 0.0
  %513 = vmatpush1.msra.mxu0 0.0
  %514 = vmatprep.subr.mxu0 0.0
  %515 = vmatpush1.msra.mxu0 0.0
  %516 = vmatprep.subr.mxu0 0.0
  %517 = vmatpush1.msra.mxu0 0.0
  %518 = vmatprep.subr.mxu0 0.0
  %519 = vmatpush1.msra.mxu0 0.0
  %520 = vmatprep.subr.mxu0 0.0
  %521 = vmatpush1.msra.mxu0 0.0
  %522 = vmatprep.subr.mxu0 0.0
  %523 = vmatpush1.msra.mxu0 0.0
  %524 = vmatprep.subr.mxu0 0.0
  %525 = vmatpush1.msra.mxu0 0.0
  %526 = vmatprep.subr.mxu0 0.0
  %527 = vmatpush1.msra.mxu0 0.0
  %528 = vmatprep.subr.mxu0 0.0
  %529 = vmatpush1.msra.mxu0 0.0
  %530 = vmatprep.subr.mxu0 0.0
  %531 = vmatpush1.msra.mxu0 0.0
  %532 = vmatprep.subr.mxu0 0.0
  %533 = vmatpush1.msra.mxu0 0.0
  %534 = vmatprep.subr.mxu0 0.0
  %535 = vmatpush1.msra.mxu0 0.0
  %536 = vmatprep.mubr.f32.mxu0 0.0
  %537 = vmatmul.mubr.f32.gmra.mrb[0].mxu0 %v467
  %v538 = vpop.f32.mrb[0].mxu0
  %v539 = vadd.f32 0.0, %v538
  %v540 = vpop.f32.mrb[0].mxu0
  %541 = vmatprep.mubr.f32.mxu0 0.0
  %542 = vmatmul.mubr.f32.gmra.mrb[0].mxu0 %v470
  %v543 = vpop.f32.mrb[0].mxu0
  %v544 = vadd.f32 0.0, %v543
  %v545 = vpop.f32.mrb[0].mxu0
  %546 = vdwg.mxu0
  %s547 = scalar_lea.vmem %s4, 32
  %548 = vst.msk [vmem:[%s547] sm:$0xff] %vm286, %v539
  %549 = vst.msk [vmem:[%s547 + $0x8] sm:$0xff] %vm286, %v544
  // Predicated region
  $region18: #{gnn_forward.2} parent=0 // pred_check
    _
  $region19: #{gnn_forward.2} parent=0 // pred_check_branch
    %551 = sbr.rel (0) target = $region21
  $region20: #{gnn_forward.2} parent=0 // pred_region
    _
  $region21: #{gnn_forward.2} parent=0 // pred_fallthru
    _
  // Predicated region
  $region22: #{gnn_forward.2} parent=0 // pred_check
    _
  $region23: #{gnn_forward.2} parent=0 // pred_check_branch
    %553 = sbr.rel (0) target = $region25
  $region24: #{gnn_forward.2} parent=0 // pred_region
    _
  $region25: #{gnn_forward.2} parent=0 // pred_fallthru
    _
  // Predicated region
  $region26: #{gnn_forward.2} parent=0 // pred_check
    _
  $region27: #{gnn_forward.2} parent=0 // pred_check_branch
    %555 = sbr.rel (0) target = $region29
  $region28: #{gnn_forward.2} parent=0 // pred_region
    _
  $region29: #{gnn_forward.2} parent=0 // pred_fallthru
    _
  // Predicated region
  $region30: #{gnn_forward.2} parent=0 // pred_check
    _
  $region31: #{gnn_forward.2} parent=0 // pred_check_branch
    %557 = sbr.rel (0) target = $region33
  $region32: #{gnn_forward.2} parent=0 // pred_region
    _
  $region33: #{gnn_forward.2} parent=0 // pred_fallthru
    _
  // Predicated region
  $region34: #{gnn_forward.2} parent=0 // pred_check
    _
  $region35: #{gnn_forward.2} parent=0 // pred_check_branch
    %559 = sbr.rel (0) target = $region37
  $region36: #{gnn_forward.2} parent=0 // pred_region
    _
  $region37: #{gnn_forward.2} parent=0 // pred_fallthru
    _
  // Predicated region
  $region38: #{gnn_forward.2} parent=0 // pred_check
    _
  $region39: #{gnn_forward.2} parent=0 // pred_check_branch
    %561 = sbr.rel (0) target = $region41
  $region40: #{gnn_forward.2} parent=0 // pred_region
    _
  $region41: #{gnn_forward.2} parent=0 // pred_fallthru
    _

// kernel: gnn_forward.3
$region0: #{gnn_forward.3}
  #allocation0 [shape = 'u32[]', space=smem, size = 0x4, offset = 0x4, fixed_abs, tag = 'smem constant byte address 0x4 - core index']
  #allocation1 [shape = 'u32[144,128]{1,0:T(1,128)}', space=vmem, size = 0x12000, scoped, tag = 'internal scratch']
  %s0 = inlined_call_operand.vmem [shape: f32[16,80], index: 0, kind: input, shape index: {}]
  %s1 = inlined_call_operand.vmem [shape: f32[80,512], index: 1, kind: input, shape index: {}]
  %s2 = inlined_call_operand.vmem [shape: f32[1,512], index: 2, kind: input, shape index: {}]
  %s3 = inlined_call_operand.vmem [shape: f32[512,128], index: 3, kind: input, shape index: {}]
  %s4 = inlined_call_operand.vmem [shape: f32[1,128], index: 4, kind: input, shape index: {}]
  %s5 = inlined_call_operand.vmem [shape: f32[16,128], index: 5, kind: output, shape index: {}]
  %s6 = sld [smem:[#allocation0]]
  $region30: #{gnn_forward.3} parent=0
    _
  %s8 = ssub.s32 1, %s6
  %s9 = scalar_select 0, %s8, %s6
  // Predicated region
  $region2: #{gnn_forward.3} parent=0 // pred_check
    _
  $region3: #{gnn_forward.3} parent=0 // pred_check_branch
    %11 = sbr.rel (0) target = $region5
  $region4: #{gnn_forward.3} parent=0 // pred_region
    _
  $region5: #{gnn_forward.3} parent=0 // pred_fallthru
    _
  // Predicated region
  $region6: #{gnn_forward.3} parent=0 // pred_check
    _
  $region7: #{gnn_forward.3} parent=0 // pred_check_branch
    %13 = sbr.rel (0) target = $region9
  $region8: #{gnn_forward.3} parent=0 // pred_region
    _
  $region9: #{gnn_forward.3} parent=0 // pred_fallthru
    _
  // Predicated region
  $region10: #{gnn_forward.3} parent=0 // pred_check
    _
  $region11: #{gnn_forward.3} parent=0 // pred_check_branch
    %15 = sbr.rel (0) target = $region13
  $region12: #{gnn_forward.3} parent=0 // pred_region
    _
  $region13: #{gnn_forward.3} parent=0 // pred_fallthru
    _
  // Predicated region
  $region14: #{gnn_forward.3} parent=0 // pred_check
    _
  $region15: #{gnn_forward.3} parent=0 // pred_check_branch
    %17 = sbr.rel (0) target = $region17
  $region16: #{gnn_forward.3} parent=0 // pred_region
    _
  $region17: #{gnn_forward.3} parent=0 // pred_fallthru
    _
  // Predicated region
  $region18: #{gnn_forward.3} parent=0 // pred_check
    _
  $region19: #{gnn_forward.3} parent=0 // pred_check_branch
    %19 = sbr.rel (0) target = $region21
  $region20: #{gnn_forward.3} parent=0 // pred_region
    _
  $region21: #{gnn_forward.3} parent=0 // pred_fallthru
    _
  %v20 = vld [vmem:[%s0] sm:$0xff]
  %v21 = vld [vmem:[%s0 + $0x8] sm:$0xff]
  %v22 = vld [vmem:[%s1] sm:$0xff]
  %v23 = vld [vmem:[%s1 + $0x8] sm:$0xff]
  %v24 = vld [vmem:[%s1 + $0x10] sm:$0xff]
  %v25 = vld [vmem:[%s1 + $0x18] sm:$0xff]
  %v26 = vld [vmem:[%s1 + $0x20] sm:$0xff]
  %v27 = vld [vmem:[%s1 + $0x28] sm:$0xff]
  %v28 = vld [vmem:[%s1 + $0x30] sm:$0xff]
  %v29 = vld [vmem:[%s1 + $0x38] sm:$0xff]
  %v30 = vld [vmem:[%s1 + $0x40] sm:$0xff]
  %v31 = vld [vmem:[%s1 + $0x48] sm:$0xff]
  %v32 = vld [vmem:[%s1 + $0x50] sm:$0xff]
  %v33 = vld [vmem:[%s1 + $0x58] sm:$0xff]
  %v34 = vld [vmem:[%s1 + $0x60] sm:$0xff]
  %v35 = vld [vmem:[%s1 + $0x68] sm:$0xff]
  %v36 = vld [vmem:[%s1 + $0x70] sm:$0xff]
  %v37 = vld [vmem:[%s1 + $0x78] sm:$0xff]
  %v38 = vld [vmem:[%s1 + $0x80] sm:$0xff]
  %v39 = vld [vmem:[%s1 + $0x88] sm:$0xff]
  %v40 = vld [vmem:[%s1 + $0x90] sm:$0xff]
  %v41 = vld [vmem:[%s1 + $0x98] sm:$0xff]
  %v42 = vld [vmem:[%s1 + $0xa0] sm:$0xff]
  %v43 = vld [vmem:[%s1 + $0xa8] sm:$0xff]
  %v44 = vld [vmem:[%s1 + $0xb0] sm:$0xff]
  %v45 = vld [vmem:[%s1 + $0xb8] sm:$0xff]
  %v46 = vld [vmem:[%s1 + $0xc0] sm:$0xff]
  %v47 = vld [vmem:[%s1 + $0xc8] sm:$0xff]
  %v48 = vld [vmem:[%s1 + $0xd0] sm:$0xff]
  %v49 = vld [vmem:[%s1 + $0xd8] sm:$0xff]
  %v50 = vld [vmem:[%s1 + $0xe0] sm:$0xff]
  %v51 = vld [vmem:[%s1 + $0xe8] sm:$0xff]
  %v52 = vld [vmem:[%s1 + $0xf0] sm:$0xff]
  %v53 = vld [vmem:[%s1 + $0xf8] sm:$0xff]
  %v54 = vld [vmem:[%s1 + $0x100] sm:$0xff]
  %v55 = vld [vmem:[%s1 + $0x108] sm:$0xff]
  %v56 = vld [vmem:[%s1 + $0x110] sm:$0xff]
  %v57 = vld [vmem:[%s1 + $0x118] sm:$0xff]
  %v58 = vld [vmem:[%s1 + $0x120] sm:$0xff]
  %v59 = vld [vmem:[%s1 + $0x128] sm:$0xff]
  %v60 = vld [vmem:[%s1 + $0x130] sm:$0xff]
  %v61 = vld [vmem:[%s1 + $0x138] sm:$0xff]
  %v62 = vld [vmem:[%s2] sm:$0xf]
  %v64 = vlaneseq
  %v65 = vshrl.u32 %v64, 7
  %v66 = vsub.s32 0, %v65
  %v67 = vrot.slane %v62, %v66
  %v68 = vlaneseq
  %v69 = vshrl.u32 %v68, 7
  %v70 = vsub.s32 1, %v69
  %v71 = vrot.slane %v62, %v70
  %v72 = vlaneseq
  %v73 = vshrl.u32 %v72, 7
  %v74 = vsub.s32 2, %v73
  %v75 = vrot.slane %v62, %v74
  %v76 = vlaneseq
  %v77 = vshrl.u32 %v76, 7
  %v78 = vsub.s32 3, %v77
  %v79 = vrot.slane %v62, %v78
  %vm84 = vcmask 654336
  %v86 = vsel %vm84, %v20, 0
  %v89 = vsel %vm84, %v21, 0
  %91 = vmatprep.subr.mxu0 %v23
  %92 = vmatpush1.msra.mxu0 %v22
  %93 = vmatprep.subr.mxu0 %v27
  %94 = vmatpush1.msra.mxu0 %v26
  %95 = vmatprep.subr.mxu0 %v31
  %96 = vmatpush1.msra.mxu0 %v30
  %97 = vmatprep.subr.mxu0 %v35
  %98 = vmatpush1.msra.mxu0 %v34
  %99 = vmatprep.subr.mxu0 %v39
  %100 = vmatpush1.msra.mxu0 %v38
  %101 = vmatprep.subr.mxu0 %v43
  %102 = vmatpush1.msra.mxu0 %v42
  %103 = vmatprep.subr.mxu0 %v47
  %104 = vmatpush1.msra.mxu0 %v46
  %105 = vmatprep.subr.mxu0 %v51
  %106 = vmatpush1.msra.mxu0 %v50
  %107 = vmatprep.subr.mxu0 %v55
  %108 = vmatpush1.msra.mxu0 %v54
  %109 = vmatprep.subr.mxu0 %v59
  %110 = vmatpush1.msra.mxu0 %v58
  %111 = vmatprep.subr.mxu0 0.0
  %112 = vmatpush1.msra.mxu0 0.0
  %113 = vmatprep.subr.mxu0 0.0
  %114 = vmatpush1.msra.mxu0 0.0
  %115 = vmatprep.subr.mxu0 0.0
  %116 = vmatpush1.msra.mxu0 0.0
  %117 = vmatprep.subr.mxu0 0.0
  %118 = vmatpush1.msra.mxu0 0.0
  %119 = vmatprep.subr.mxu0 0.0
  %120 = vmatpush1.msra.mxu0 0.0
  %121 = vmatprep.subr.mxu0 0.0
  %122 = vmatpush1.msra.mxu0 0.0
  %123 = vmatprep.subr.mxu0 0.0
  %124 = vmatpush1.msra.mxu0 0.0
  %125 = vmatprep.subr.mxu0 0.0
  %126 = vmatpush1.msra.mxu0 0.0
  %127 = vmatprep.subr.mxu0 0.0
  %128 = vmatpush1.msra.mxu0 0.0
  %129 = vmatprep.subr.mxu0 0.0
  %130 = vmatpush1.msra.mxu0 0.0
  %131 = vmatprep.subr.mxu0 0.0
  %132 = vmatpush1.msra.mxu0 0.0
  %133 = vmatprep.subr.mxu0 0.0
  %134 = vmatpush1.msra.mxu0 0.0
  %135 = vmatprep.subr.mxu0 0.0
  %136 = vmatpush1.msra.mxu0 0.0
  %137 = vmatprep.subr.mxu0 0.0
  %138 = vmatpush1.msra.mxu0 0.0
  %139 = vmatprep.subr.mxu0 0.0
  %140 = vmatpush1.msra.mxu0 0.0
  %141 = vmatprep.subr.mxu0 0.0
  %142 = vmatpush1.msra.mxu0 0.0
  %143 = vmatprep.subr.mxu0 0.0
  %144 = vmatpush1.msra.mxu0 0.0
  %145 = vmatprep.subr.mxu0 0.0
  %146 = vmatpush1.msra.mxu0 0.0
  %147 = vmatprep.subr.mxu0 0.0
  %148 = vmatpush1.msra.mxu0 0.0
  %149 = vmatprep.subr.mxu0 0.0
  %150 = vmatpush1.msra.mxu0 0.0
  %151 = vmatprep.subr.mxu0 0.0
  %152 = vmatpush1.msra.mxu0 0.0
  %153 = vmatprep.subr.mxu0 0.0
  %154 = vmatpush1.msra.mxu0 0.0
  %155 = vmatprep.mubr.f32.mxu0 0.0
  %156 = vmatmul.mubr.f32.gmra.mrb[0].mxu0 %v86
  %v157 = vpop.f32.mrb[0].mxu0
  %v158 = vadd.f32 %v67, %v157
  %v159 = vpop.f32.mrb[0].mxu0
  %v160 = vadd.f32 %v71, %v159
  %161 = vmatprep.mubr.f32.mxu0 0.0
  %162 = vmatmul.mubr.f32.gmra.mrb[0].mxu0 %v89
  %v163 = vpop.f32.mrb[0].mxu0
  %v164 = vadd.f32 %v67, %v163
  %v165 = vpop.f32.mrb[0].mxu0
  %v166 = vadd.f32 %v71, %v165
  %167 = vdwg.mxu0
  %168 = vmatprep.subr.mxu0 %v25
  %169 = vmatpush1.msra.mxu0 %v24
  %170 = vmatprep.subr.mxu0 %v29
  %171 = vmatpush1.msra.mxu0 %v28
  %172 = vmatprep.subr.mxu0 %v33
  %173 = vmatpush1.msra.mxu0 %v32
  %174 = vmatprep.subr.mxu0 %v37
  %175 = vmatpush1.msra.mxu0 %v36
  %176 = vmatprep.subr.mxu0 %v41
  %177 = vmatpush1.msra.mxu0 %v40
  %178 = vmatprep.subr.mxu0 %v45
  %179 = vmatpush1.msra.mxu0 %v44
  %180 = vmatprep.subr.mxu0 %v49
  %181 = vmatpush1.msra.mxu0 %v48
  %182 = vmatprep.subr.mxu0 %v53
  %183 = vmatpush1.msra.mxu0 %v52
  %184 = vmatprep.subr.mxu0 %v57
  %185 = vmatpush1.msra.mxu0 %v56
  %186 = vmatprep.subr.mxu0 %v61
  %187 = vmatpush1.msra.mxu0 %v60
  %188 = vmatprep.subr.mxu0 0.0
  %189 = vmatpush1.msra.mxu0 0.0
  %190 = vmatprep.subr.mxu0 0.0
  %191 = vmatpush1.msra.mxu0 0.0
  %192 = vmatprep.subr.mxu0 0.0
  %193 = vmatpush1.msra.mxu0 0.0
  %194 = vmatprep.subr.mxu0 0.0
  %195 = vmatpush1.msra.mxu0 0.0
  %196 = vmatprep.subr.mxu0 0.0
  %197 = vmatpush1.msra.mxu0 0.0
  %198 = vmatprep.subr.mxu0 0.0
  %199 = vmatpush1.msra.mxu0 0.0
  %200 = vmatprep.subr.mxu0 0.0
  %201 = vmatpush1.msra.mxu0 0.0
  %202 = vmatprep.subr.mxu0 0.0
  %203 = vmatpush1.msra.mxu0 0.0
  %204 = vmatprep.subr.mxu0 0.0
  %205 = vmatpush1.msra.mxu0 0.0
  %206 = vmatprep.subr.mxu0 0.0
  %207 = vmatpush1.msra.mxu0 0.0
  %208 = vmatprep.subr.mxu0 0.0
  %209 = vmatpush1.msra.mxu0 0.0
  %210 = vmatprep.subr.mxu0 0.0
  %211 = vmatpush1.msra.mxu0 0.0
  %212 = vmatprep.subr.mxu0 0.0
  %213 = vmatpush1.msra.mxu0 0.0
  %214 = vmatprep.subr.mxu0 0.0
  %215 = vmatpush1.msra.mxu0 0.0
  %216 = vmatprep.subr.mxu0 0.0
  %217 = vmatpush1.msra.mxu0 0.0
  %218 = vmatprep.subr.mxu0 0.0
  %219 = vmatpush1.msra.mxu0 0.0
  %220 = vmatprep.subr.mxu0 0.0
  %221 = vmatpush1.msra.mxu0 0.0
  %222 = vmatprep.subr.mxu0 0.0
  %223 = vmatpush1.msra.mxu0 0.0
  %224 = vmatprep.subr.mxu0 0.0
  %225 = vmatpush1.msra.mxu0 0.0
  %226 = vmatprep.subr.mxu0 0.0
  %227 = vmatpush1.msra.mxu0 0.0
  %228 = vmatprep.subr.mxu0 0.0
  %229 = vmatpush1.msra.mxu0 0.0
  %230 = vmatprep.subr.mxu0 0.0
  %231 = vmatpush1.msra.mxu0 0.0
  %232 = vmatprep.mubr.f32.mxu0 0.0
  %233 = vmatmul.mubr.f32.gmra.mrb[0].mxu0 %v86
  %v234 = vpop.f32.mrb[0].mxu0
  %v235 = vadd.f32 %v75, %v234
  %v236 = vpop.f32.mrb[0].mxu0
  %v237 = vadd.f32 %v79, %v236
  %238 = vmatprep.mubr.f32.mxu0 0.0
  %239 = vmatmul.mubr.f32.gmra.mrb[0].mxu0 %v89
  %v240 = vpop.f32.mrb[0].mxu0
  %v241 = vadd.f32 %v75, %v240
  %v242 = vpop.f32.mrb[0].mxu0
  %v243 = vadd.f32 %v79, %v242
  %244 = vdwg.mxu0
  %v245 = vmax.f32 %v158, 0.0
  %v246 = vmax.f32 %v160, 0.0
  %v247 = vmax.f32 %v235, 0.0
  %v248 = vmax.f32 %v237, 0.0
  %v249 = vmax.f32 %v164, 0.0
  %v250 = vmax.f32 %v166, 0.0
  %v251 = vmax.f32 %v241, 0.0
  %v252 = vmax.f32 %v243, 0.0
  %v253 = vld [vmem:[%s3] sm:$0xff]
  %v254 = vld [vmem:[%s3 + $0x8] sm:$0xff]
  %v255 = vld [vmem:[%s3 + $0x10] sm:$0xff]
  %v256 = vld [vmem:[%s3 + $0x18] sm:$0xff]
  %v257 = vld [vmem:[%s3 + $0x20] sm:$0xff]
  %v258 = vld [vmem:[%s3 + $0x28] sm:$0xff]
  %v259 = vld [vmem:[%s3 + $0x30] sm:$0xff]
  %v260 = vld [vmem:[%s3 + $0x38] sm:$0xff]
  %v261 = vld [vmem:[%s3 + $0x40] sm:$0xff]
  %v262 = vld [vmem:[%s3 + $0x48] sm:$0xff]
  %v263 = vld [vmem:[%s3 + $0x50] sm:$0xff]
  %v264 = vld [vmem:[%s3 + $0x58] sm:$0xff]
  %v265 = vld [vmem:[%s3 + $0x60] sm:$0xff]
  %v266 = vld [vmem:[%s3 + $0x68] sm:$0xff]
  %v267 = vld [vmem:[%s3 + $0x70] sm:$0xff]
  %v268 = vld [vmem:[%s3 + $0x78] sm:$0xff]
  %v269 = vld [vmem:[%s3 + $0x80] sm:$0xff]
  %v270 = vld [vmem:[%s3 + $0x88] sm:$0xff]
  %v271 = vld [vmem:[%s3 + $0x90] sm:$0xff]
  %v272 = vld [vmem:[%s3 + $0x98] sm:$0xff]
  %v273 = vld [vmem:[%s3 + $0xa0] sm:$0xff]
  %v274 = vld [vmem:[%s3 + $0xa8] sm:$0xff]
  %v275 = vld [vmem:[%s3 + $0xb0] sm:$0xff]
  %v276 = vld [vmem:[%s3 + $0xb8] sm:$0xff]
  %v277 = vld [vmem:[%s3 + $0xc0] sm:$0xff]
  %v278 = vld [vmem:[%s3 + $0xc8] sm:$0xff]
  %v279 = vld [vmem:[%s3 + $0xd0] sm:$0xff]
  %v280 = vld [vmem:[%s3 + $0xd8] sm:$0xff]
  %v281 = vld [vmem:[%s3 + $0xe0] sm:$0xff]
  %v282 = vld [vmem:[%s3 + $0xe8] sm:$0xff]
  %v283 = vld [vmem:[%s3 + $0xf0] sm:$0xff]
  %v284 = vld [vmem:[%s3 + $0xf8] sm:$0xff]
  %v285 = vld [vmem:[%s3 + $0x100] sm:$0xff]
  %v286 = vld [vmem:[%s3 + $0x108] sm:$0xff]
  %v287 = vld [vmem:[%s3 + $0x110] sm:$0xff]
  %v288 = vld [vmem:[%s3 + $0x118] sm:$0xff]
  %v289 = vld [vmem:[%s3 + $0x120] sm:$0xff]
  %v290 = vld [vmem:[%s3 + $0x128] sm:$0xff]
  %v291 = vld [vmem:[%s3 + $0x130] sm:$0xff]
  %v292 = vld [vmem:[%s3 + $0x138] sm:$0xff]
  %v293 = vld [vmem:[%s3 + $0x140] sm:$0xff]
  %v294 = vld [vmem:[%s3 + $0x148] sm:$0xff]
  %v295 = vld [vmem:[%s3 + $0x150] sm:$0xff]
  %v296 = vld [vmem:[%s3 + $0x158] sm:$0xff]
  %v297 = vld [vmem:[%s3 + $0x160] sm:$0xff]
  %v298 = vld [vmem:[%s3 + $0x168] sm:$0xff]
  %v299 = vld [vmem:[%s3 + $0x170] sm:$0xff]
  %v300 = vld [vmem:[%s3 + $0x178] sm:$0xff]
  %v301 = vld [vmem:[%s3 + $0x180] sm:$0xff]
  %v302 = vld [vmem:[%s3 + $0x188] sm:$0xff]
  %v303 = vld [vmem:[%s3 + $0x190] sm:$0xff]
  %v304 = vld [vmem:[%s3 + $0x198] sm:$0xff]
  %v305 = vld [vmem:[%s3 + $0x1a0] sm:$0xff]
  %v306 = vld [vmem:[%s3 + $0x1a8] sm:$0xff]
  %v307 = vld [vmem:[%s3 + $0x1b0] sm:$0xff]
  %v308 = vld [vmem:[%s3 + $0x1b8] sm:$0xff]
  %v309 = vld [vmem:[%s3 + $0x1c0] sm:$0xff]
  %v310 = vld [vmem:[%s3 + $0x1c8] sm:$0xff]
  %v311 = vld [vmem:[%s3 + $0x1d0] sm:$0xff]
  %v312 = vld [vmem:[%s3 + $0x1d8] sm:$0xff]
  %v313 = vld [vmem:[%s3 + $0x1e0] sm:$0xff]
  %v314 = vld [vmem:[%s3 + $0x1e8] sm:$0xff]
  %v315 = vld [vmem:[%s3 + $0x1f0] sm:$0xff]
  %v316 = vld [vmem:[%s3 + $0x1f8] sm:$0xff]
  %v317 = vld [vmem:[%s4] sm:$0x1]
  %v319 = vlaneseq
  %v320 = vshrl.u32 %v319, 7
  %v321 = vsub.s32 0, %v320
  %v322 = vrot.slane %v317, %v321
  %324 = vmatprep.subr.mxu0 0.0
  %325 = vmatpush1.msra.mxu0 %v253
  %326 = vmatprep.subr.mxu0 0.0
  %327 = vmatpush1.msra.mxu0 %v254
  %328 = vmatprep.subr.mxu0 0.0
  %329 = vmatpush1.msra.mxu0 %v255
  %330 = vmatprep.subr.mxu0 0.0
  %331 = vmatpush1.msra.mxu0 %v256
  %332 = vmatprep.subr.mxu0 0.0
  %333 = vmatpush1.msra.mxu0 %v257
  %334 = vmatprep.subr.mxu0 0.0
  %335 = vmatpush1.msra.mxu0 %v258
  %336 = vmatprep.subr.mxu0 0.0
  %337 = vmatpush1.msra.mxu0 %v259
  %338 = vmatprep.subr.mxu0 0.0
  %339 = vmatpush1.msra.mxu0 %v260
  %340 = vmatprep.subr.mxu0 0.0
  %341 = vmatpush1.msra.mxu0 %v261
  %342 = vmatprep.subr.mxu0 0.0
  %343 = vmatpush1.msra.mxu0 %v262
  %344 = vmatprep.subr.mxu0 0.0
  %345 = vmatpush1.msra.mxu0 %v263
  %346 = vmatprep.subr.mxu0 0.0
  %347 = vmatpush1.msra.mxu0 %v264
  %348 = vmatprep.subr.mxu0 0.0
  %349 = vmatpush1.msra.mxu0 %v265
  %350 = vmatprep.subr.mxu0 0.0
  %351 = vmatpush1.msra.mxu0 %v266
  %352 = vmatprep.subr.mxu0 0.0
  %353 = vmatpush1.msra.mxu0 %v267
  %354 = vmatprep.subr.mxu0 0.0
  %355 = vmatpush1.msra.mxu0 %v268
  %356 = vmatprep.subr.mxu0 0.0
  %357 = vmatpush1.msra.mxu0 %v269
  %358 = vmatprep.subr.mxu0 0.0
  %359 = vmatpush1.msra.mxu0 %v270
  %360 = vmatprep.subr.mxu0 0.0
  %361 = vmatpush1.msra.mxu0 %v271
  %362 = vmatprep.subr.mxu0 0.0
  %363 = vmatpush1.msra.mxu0 %v272
  %364 = vmatprep.subr.mxu0 0.0
  %365 = vmatpush1.msra.mxu0 %v273
  %366 = vmatprep.subr.mxu0 0.0
  %367 = vmatpush1.msra.mxu0 %v274
  %368 = vmatprep.subr.mxu0 0.0
  %369 = vmatpush1.msra.mxu0 %v275
  %370 = vmatprep.subr.mxu0 0.0
  %371 = vmatpush1.msra.mxu0 %v276
  %372 = vmatprep.subr.mxu0 0.0
  %373 = vmatpush1.msra.mxu0 %v277
  %374 = vmatprep.subr.mxu0 0.0
  %375 = vmatpush1.msra.mxu0 %v278
  %376 = vmatprep.subr.mxu0 0.0
  %377 = vmatpush1.msra.mxu0 %v279
  %378 = vmatprep.subr.mxu0 0.0
  %379 = vmatpush1.msra.mxu0 %v280
  %380 = vmatprep.subr.mxu0 0.0
  %381 = vmatpush1.msra.mxu0 %v281
  %382 = vmatprep.subr.mxu0 0.0
  %383 = vmatpush1.msra.mxu0 %v282
  %384 = vmatprep.subr.mxu0 0.0
  %385 = vmatpush1.msra.mxu0 %v283
  %386 = vmatprep.subr.mxu0 0.0
  %387 = vmatpush1.msra.mxu0 %v284
  %388 = vmatprep.mubr.f32.mxu0 %v246
  %389 = vmatmul.mubr.f32.gmra.mrb[0].mxu0 %v245
  %v390 = vpop.f32.mrb[0].mxu0
  %v391 = vadd.f32 %v322, %v390
  %v392 = vpop.f32.mrb[0].mxu0
  %393 = vmatprep.mubr.f32.mxu0 %v250
  %394 = vmatmul.mubr.f32.gmra.mrb[0].mxu0 %v249
  %v395 = vpop.f32.mrb[0].mxu0
  %v396 = vadd.f32 %v322, %v395
  %v397 = vpop.f32.mrb[0].mxu0
  %398 = vdwg.mxu0
  %399 = vmatprep.subr.mxu0 0.0
  %400 = vmatpush1.msra.mxu0 %v285
  %401 = vmatprep.subr.mxu0 0.0
  %402 = vmatpush1.msra.mxu0 %v286
  %403 = vmatprep.subr.mxu0 0.0
  %404 = vmatpush1.msra.mxu0 %v287
  %405 = vmatprep.subr.mxu0 0.0
  %406 = vmatpush1.msra.mxu0 %v288
  %407 = vmatprep.subr.mxu0 0.0
  %408 = vmatpush1.msra.mxu0 %v289
  %409 = vmatprep.subr.mxu0 0.0
  %410 = vmatpush1.msra.mxu0 %v290
  %411 = vmatprep.subr.mxu0 0.0
  %412 = vmatpush1.msra.mxu0 %v291
  %413 = vmatprep.subr.mxu0 0.0
  %414 = vmatpush1.msra.mxu0 %v292
  %415 = vmatprep.subr.mxu0 0.0
  %416 = vmatpush1.msra.mxu0 %v293
  %417 = vmatprep.subr.mxu0 0.0
  %418 = vmatpush1.msra.mxu0 %v294
  %419 = vmatprep.subr.mxu0 0.0
  %420 = vmatpush1.msra.mxu0 %v295
  %421 = vmatprep.subr.mxu0 0.0
  %422 = vmatpush1.msra.mxu0 %v296
  %423 = vmatprep.subr.mxu0 0.0
  %424 = vmatpush1.msra.mxu0 %v297
  %425 = vmatprep.subr.mxu0 0.0
  %426 = vmatpush1.msra.mxu0 %v298
  %427 = vmatprep.subr.mxu0 0.0
  %428 = vmatpush1.msra.mxu0 %v299
  %429 = vmatprep.subr.mxu0 0.0
  %430 = vmatpush1.msra.mxu0 %v300
  %431 = vmatprep.subr.mxu0 0.0
  %432 = vmatpush1.msra.mxu0 %v301
  %433 = vmatprep.subr.mxu0 0.0
  %434 = vmatpush1.msra.mxu0 %v302
  %435 = vmatprep.subr.mxu0 0.0
  %436 = vmatpush1.msra.mxu0 %v303
  %437 = vmatprep.subr.mxu0 0.0
  %438 = vmatpush1.msra.mxu0 %v304
  %439 = vmatprep.subr.mxu0 0.0
  %440 = vmatpush1.msra.mxu0 %v305
  %441 = vmatprep.subr.mxu0 0.0
  %442 = vmatpush1.msra.mxu0 %v306
  %443 = vmatprep.subr.mxu0 0.0
  %444 = vmatpush1.msra.mxu0 %v307
  %445 = vmatprep.subr.mxu0 0.0
  %446 = vmatpush1.msra.mxu0 %v308
  %447 = vmatprep.subr.mxu0 0.0
  %448 = vmatpush1.msra.mxu0 %v309
  %449 = vmatprep.subr.mxu0 0.0
  %450 = vmatpush1.msra.mxu0 %v310
  %451 = vmatprep.subr.mxu0 0.0
  %452 = vmatpush1.msra.mxu0 %v311
  %453 = vmatprep.subr.mxu0 0.0
  %454 = vmatpush1.msra.mxu0 %v312
  %455 = vmatprep.subr.mxu0 0.0
  %456 = vmatpush1.msra.mxu0 %v313
  %457 = vmatprep.subr.mxu0 0.0
  %458 = vmatpush1.msra.mxu0 %v314
  %459 = vmatprep.subr.mxu0 0.0
  %460 = vmatpush1.msra.mxu0 %v315
  %461 = vmatprep.subr.mxu0 0.0
  %462 = vmatpush1.msra.mxu0 %v316
  %463 = vmatprep.mubr.f32.mxu0 %v248
  %464 = vmatmul.mubr.f32.gmra.mrb[0].mxu0 %v247
  %v465 = vpop.f32.mrb[0].mxu0
  %v466 = vadd.f32 %v391, %v465
  %v467 = vpop.f32.mrb[0].mxu0
  %468 = vmatprep.mubr.f32.mxu0 %v252
  %469 = vmatmul.mubr.f32.gmra.mrb[0].mxu0 %v251
  %v470 = vpop.f32.mrb[0].mxu0
  %v471 = vadd.f32 %v396, %v470
  %v472 = vpop.f32.mrb[0].mxu0
  %473 = vdwg.mxu0
  %474 = vst [vmem:[%s5] sm:$0xff] %v466
  %475 = vst [vmem:[%s5 + $0x8] sm:$0xff] %v471
  // Predicated region
  $region22: #{gnn_forward.3} parent=0 // pred_check
    _
  $region23: #{gnn_forward.3} parent=0 // pred_check_branch
    %477 = sbr.rel (0) target = $region25
  $region24: #{gnn_forward.3} parent=0 // pred_region
    _
  $region25: #{gnn_forward.3} parent=0 // pred_fallthru
    _
  // Predicated region
  $region26: #{gnn_forward.3} parent=0 // pred_check
    _
  $region27: #{gnn_forward.3} parent=0 // pred_check_branch
    %479 = sbr.rel (0) target = $region29
  $region28: #{gnn_forward.3} parent=0 // pred_region
    _
  $region29: #{gnn_forward.3} parent=0 // pred_fallthru
    _

</llo_original>
